<compile_context>
chip_gen: v7x
topology: tpu7x:2x2x1
jax: 0.10.0
libtpu: 0.0.40
codegen_flags: <defaults>
</compile_context>

<pallas_src>
import jax
import jax.numpy as jnp
from jax.experimental import pallas as pl
from jax.experimental.pallas import tpu as pltpu

EPS = 1e-5
_TARGET_TILE_BYTES = 2 * 1024 * 1024   # conservative per-step working-set target (v7x-safe)
_VMEM_CAP_BYTES = 48 * 1024 * 1024     # leave headroom for Mosaic scratch on v7x (64 MiB/TC)


def _layernorm_kernel(x_ref, gamma_ref, beta_ref, ln_ref):
    # x block: (TB, C, L); gamma/beta blocks: (C, 1) — constant index_map, stay resident.
    xf = x_ref[...].astype(jnp.float32)

    # LayerNorm over the channel axis (axis 1 here == last axis of the (N, L, C) view the
    # PyTorch nn.LayerNorm sees).  Two-pass moments: stable, and the extra VPU work is
    # free on a memory-bound kernel.
    mean = jnp.mean(xf, axis=1, keepdims=True)                 # (TB, 1, L)
    centered = xf - mean
    var = jnp.mean(centered * centered, axis=1, keepdims=True)  # biased var, as PyTorch
    inv = jax.lax.rsqrt(var + EPS)                              # EUP slot

    gamma = gamma_ref[...][None, :, :]                          # (1, C, 1), already f32
    beta = beta_ref[...][None, :, :]
    ln_ref[...] = (centered * inv * gamma + beta).astype(ln_ref.dtype)


def _choose_batch_tile(N, C, L, x_itemsize):
    """Rows of the batch per grid step.

    Budget counts the x tile, the f32 ln output tile, and ~2 live f32 temporaries.
    Prefers an even grid length >= 2 (v7x megacore) and lets Pallas pad a ragged tail
    instead of forcing tb | N.
    """
    per_n = C * L * (x_itemsize + 4 + 2 * 4)
    tb = max(1, min(N, _TARGET_TILE_BYTES // max(per_n, 1)))
    g = pl.cdiv(N, tb)
    if g == 1 and N >= 2:
        tb = pl.cdiv(N, 2)            # give the two TensorCores something to split
    elif g > 1 and g % 2 == 1:
        tb = pl.cdiv(N, g + 1)        # nudge to an even grid
    return tb


def _vmem_limit(tb, C, L, x_itemsize):
    # Double-buffered pipeline: ~2x per-step working set (x tile + f32 ln tile + f32
    # temporaries) plus slack, capped below physical VMEM on every generation.
    per_step = tb * C * L * (x_itemsize + 4 + 2 * 4)
    need = 2 * per_step + (4 << 20)
    return int(min(max(need, 16 << 20), _VMEM_CAP_BYTES))


def layernorm_t_forward(x, gamma, beta, *, return_ln=False):
    """Pallas implementation of LayerNormT.forward for x of shape (N, C, L).

    The PyTorch module discards the LayerNorm result and returns its input unchanged, so
    the default path launches no kernel and returns x as-is (zero HBM traffic).  With
    return_ln=True it additionally materializes the LayerNorm over the channel axis that
    the module computes internally (float32), returning (x, ln).
    """
    if not return_ln:
        return x  # faithful to the module: identity, no copy, no kernel launch

    N, C, L = x.shape
    itemsize = jnp.dtype(x.dtype).itemsize
    tb = _choose_batch_tile(N, C, L, itemsize)
    grid = (pl.cdiv(N, tb),)                      # ragged tail handled by Pallas

    x_blk = pl.BlockSpec((tb, C, L), lambda b: (b, 0, 0))
    ln_blk = pl.BlockSpec((tb, C, L), lambda b: (b, 0, 0))
    param_spec = pl.BlockSpec((C, 1), lambda b: (0, 0))   # constant block -> resident

    gamma2d = gamma.reshape(C, 1).astype(jnp.float32)
    beta2d = beta.reshape(C, 1).astype(jnp.float32)

    ln = pl.pallas_call(
        _layernorm_kernel,
        out_shape=jax.ShapeDtypeStruct((N, C, L), jnp.float32),
        grid_spec=pltpu.PrefetchScalarGridSpec(
            num_scalar_prefetch=0,
            grid=grid,
            in_specs=[x_blk, param_spec, param_spec],
            out_specs=ln_blk,
        ),
        compiler_params=pltpu.CompilerParams(
            dimension_semantics=("parallel",),
            vmem_limit_bytes=_vmem_limit(tb, C, L, itemsize),
        ),
    )(x, gamma2d, beta2d)
    return x, ln


if __name__ == "__main__":
    # Small shapes consistent with the module: (N, C, L), n_dim == C.
    N, C, L = 4, 8, 128
    key = jax.random.PRNGKey(0)
    x = jax.random.normal(key, (N, C, L), dtype=jnp.float32)

    # nn.LayerNorm(n_dim) default init: weight = ones, bias = zeros.
    gamma = jnp.ones((C,), dtype=jnp.float32)
    beta = jnp.zeros((C,), dtype=jnp.float32)

    # Fast path — faithful to PyTorch: the LayerNorm result is discarded, the input is
    # returned unchanged, and no kernel / no copy is needed.
    out = layernorm_t_forward(x, gamma, beta)
    out = jax.block_until_ready(out)
    assert jnp.array_equal(out, x), "passthrough output must equal input"

    # Verification path — materialize the LayerNorm the module computes and discards.
    out2, ln = layernorm_t_forward(x, gamma, beta, return_ln=True)
    out2 = jax.block_until_ready(out2)
    ln = jax.block_until_ready(ln)
    assert jnp.array_equal(out2, x), "passthrough output must equal input (ln path)"

    xf = x.astype(jnp.float32)
    mean = xf.mean(axis=1, keepdims=True)
    var = ((xf - mean) ** 2).mean(axis=1, keepdims=True)
    ln_ref = (xf - mean) / jnp.sqrt(var + EPS) * gamma[None, :, None] + beta[None, :, None]
    assert jnp.allclose(ln, ln_ref, atol=1e-5, rtol=1e-5), "layernorm compute mismatch"

    print("KERNEL_OK")
</pallas_src>

<mosaic_0001>
module attributes {stable_mosaic.version = 11 : i64} {
  func.func @_layernorm_kernel(%arg0: i32, %arg1: memref<2x8x128xf32, #tpu.memory_space<vmem>>, %arg2: memref<8x1xf32, #tpu.memory_space<vmem>>, %arg3: memref<8x1xf32, #tpu.memory_space<vmem>>, %arg4: memref<2x8x128xf32, #tpu.memory_space<vmem>>) attributes {dimension_semantics = [#tpu.dimension_semantics<parallel>], iteration_bounds = array<i64: 2>, scalar_prefetch = 0 : i64, scratch_operands = 0 : i64, tpu.core_type = #tpu.core_type<tc>, window_params = [{transform_indices = @transform_0, window_bounds = array<i64: 2, 8, 128>}, {pipeline_mode = #tpu.pipeline_mode<synchronous>, transform_indices = @transform_1, window_bounds = array<i64: 8, 1>}, {pipeline_mode = #tpu.pipeline_mode<synchronous>, transform_indices = @transform_2, window_bounds = array<i64: 8, 1>}, {transform_indices = @transform_3, window_bounds = array<i64: 2, 8, 128>}]} {
    %c0 = arith.constant 0 : index
    %c0_0 = arith.constant 0 : index
    %c0_1 = arith.constant 0 : index
    %0 = vector.load %arg1[%c0, %c0_0, %c0_1] : memref<2x8x128xf32, #tpu.memory_space<vmem>>, vector<2x8x128xf32>
    %cst = arith.constant dense<0.000000e+00> : vector<2x128xf32>
    %1 = vector.multi_reduction <add>, %0, %cst [1] : vector<2x8x128xf32> to vector<2x128xf32>
    %2 = vector.shape_cast %1 : vector<2x128xf32> to vector<2x1x128xf32>
    %cst_2 = arith.constant 8.000000e+00 : f32
    %3 = vector.broadcast %cst_2 : f32 to vector<2x1x128xf32>
    %4 = arith.divf %2, %3 : vector<2x1x128xf32>
    %5 = vector.broadcast %4 : vector<2x1x128xf32> to vector<2x8x128xf32>
    %6 = arith.subf %0, %5 : vector<2x8x128xf32>
    %7 = arith.mulf %6, %6 : vector<2x8x128xf32>
    %cst_3 = arith.constant dense<0.000000e+00> : vector<2x128xf32>
    %8 = vector.multi_reduction <add>, %7, %cst_3 [1] : vector<2x8x128xf32> to vector<2x128xf32>
    %9 = vector.shape_cast %8 : vector<2x128xf32> to vector<2x1x128xf32>
    %cst_4 = arith.constant 8.000000e+00 : f32
    %10 = vector.broadcast %cst_4 : f32 to vector<2x1x128xf32>
    %11 = arith.divf %9, %10 : vector<2x1x128xf32>
    %cst_5 = arith.constant 9.99999974E-6 : f32
    %12 = vector.broadcast %cst_5 : f32 to vector<2x1x128xf32>
    %13 = arith.addf %11, %12 : vector<2x1x128xf32>
    %14 = math.rsqrt %13 : vector<2x1x128xf32>
    %c0_6 = arith.constant 0 : index
    %c0_7 = arith.constant 0 : index
    %15 = vector.load %arg2[%c0_6, %c0_7] : memref<8x1xf32, #tpu.memory_space<vmem>>, vector<8x1xf32>
    %16 = vector.shape_cast %15 : vector<8x1xf32> to vector<1x8x1xf32>
    %c0_8 = arith.constant 0 : index
    %c0_9 = arith.constant 0 : index
    %17 = vector.load %arg3[%c0_8, %c0_9] : memref<8x1xf32, #tpu.memory_space<vmem>>, vector<8x1xf32>
    %18 = vector.shape_cast %17 : vector<8x1xf32> to vector<1x8x1xf32>
    %19 = vector.broadcast %14 : vector<2x1x128xf32> to vector<2x8x128xf32>
    %20 = arith.mulf %6, %19 : vector<2x8x128xf32>
    %21 = vector.broadcast %16 : vector<1x8x1xf32> to vector<2x8x128xf32>
    %22 = arith.mulf %20, %21 : vector<2x8x128xf32>
    %23 = vector.broadcast %18 : vector<1x8x1xf32> to vector<2x8x128xf32>
    %24 = arith.addf %22, %23 : vector<2x8x128xf32>
    %c0_10 = arith.constant 0 : index
    %c0_11 = arith.constant 0 : index
    %c0_12 = arith.constant 0 : index
    %25 = vector.load %arg4[%c0_10, %c0_11, %c0_12] : memref<2x8x128xf32, #tpu.memory_space<vmem>>, vector<2x8x128xf32>
    tpu.vector_store %arg4[%c0_10, %c0_11, %c0_12], %24 {strides = array<i32>} : memref<2x8x128xf32, #tpu.memory_space<vmem>>, vector<2x8x128xf32>,
    return
  }
  func.func @transform_0(%arg0: i32) -> (i32, i32, i32) {
    %c0_i32 = arith.constant 0 : i32
    %c0_i32_0 = arith.constant 0 : i32
    %c0_i32_1 = arith.constant 0 : i32
    return %arg0, %c0_i32, %c0_i32_0 : i32, i32, i32
  }
  func.func @transform_1(%arg0: i32) -> (i32, i32) {
    %c0_i32 = arith.constant 0 : i32
    %c0_i32_0 = arith.constant 0 : i32
    %c0_i32_1 = arith.constant 0 : i32
    return %c0_i32, %c0_i32_0 : i32, i32
  }
  func.func @transform_2(%arg0: i32) -> (i32, i32) {
    %c0_i32 = arith.constant 0 : i32
    %c0_i32_0 = arith.constant 0 : i32
    %c0_i32_1 = arith.constant 0 : i32
    return %c0_i32, %c0_i32_0 : i32, i32
  }
  func.func @transform_3(%arg0: i32) -> (i32, i32, i32) {
    %c0_i32 = arith.constant 0 : i32
    %c0_i32_0 = arith.constant 0 : i32
    %c0_i32_1 = arith.constant 0 : i32
    return %arg0, %c0_i32, %c0_i32_0 : i32, i32, i32
  }
}

</mosaic_0001>

<llo_original>
// kernel: tpu_custom_call.1
$region0: #{tpu_custom_call.1}
  #allocation0 [shape = 'u32[]', space=smem, size = 0x4, offset = 0x4, fixed_abs, tag = 'smem constant byte address 0x4 - core index']
  #allocation1 [shape = 'u32[144,128]{1,0:T(1,128)}', space=vmem, size = 0x12000, scoped, tag = 'internal scratch']
  %s0 = inlined_call_operand.hbm [shape: f32[4,8,128], index: 0, kind: input, shape index: {}]
  %s1 = inlined_call_operand.vmem [shape: f32[8,1], index: 1, kind: input, shape index: {}]
  %s2 = inlined_call_operand.vmem [shape: f32[8,1], index: 2, kind: input, shape index: {}]
  %s3 = inlined_call_operand.hbm [shape: f32[4,8,128], index: 3, kind: output, shape index: {}]
  %s4 = sld [smem:[#allocation0]]
  $region49: #{tpu_custom_call.1} parent=0
    _
  %s6 = ssub.s32 1, %s4
  %s7 = scalar_select 0, %s6, %s4
  $region1: #{tpu_custom_call.1} parent=0
    #allocation2 [shape = 'u8[16384]{0}', space=vmem, size = 0x4000, scoped, tag = 'input window, operand 0']
    #allocation3 [shape = 's32[2]{0}', space=sflag, size = 0x8, scoped, tag = 'scoped memory for tpu_custom_call.1']
    #allocation4 [shape = 's32[2]{0}', space=sflag, size = 0x8, scoped, tag = 'scoped memory for tpu_custom_call.1']
    #allocation5 [shape = 'u8[16384]{0}', space=vmem, size = 0x4000, scoped, tag = 'output window, operand 0']
    %8 = vsyncpa [#allocation3], 0
    %s9 = scalar_lea.sflag [#allocation3], 1
    %10 = vsyncpa %s9, 0
    %11 = vsyncpa [#allocation4], 0
    %s12 = scalar_lea.sflag [#allocation4], 1
    %13 = vsyncpa %s12, 0
    loop: start=0, step=1, limit=4
    $region2: #{tpu_custom_call.1} parent=1 // loop_pre_header
      _
    $region3: #{tpu_custom_call.1} parent=1 // loop_header
      %s15 = sphi 0, %s19
      %p16 = scmp.ge.s32.totalorder %s15, 4
      %s25 = sphi 0, %s27
      %s28 = sphi 0, %s25
      %s29 = sphi 0, %s28
      %s45 = sphi 0, %s29
      %s49 = sphi 0, %s49
      %s51 = sphi 0, %s49
      %s52 = sphi 0, %s51
      %s66 = sphi 0, %s52
      %s70 = sphi 0, %s70
      %s72 = sphi 0, %s70
      %s73 = sphi 0, %s72
      %s87 = sphi 0, %s73
      %s93 = sphi 0, %s95
      %s96 = sphi 0, %s93
      %s97 = sphi 0, %s96
      %s113 = sphi 0, %s97
    $region4: #{tpu_custom_call.1} parent=1 // loop_header_branch
      %18 = sbr.rel (%p16) target = $region8
    $region5: #{tpu_custom_call.1} parent=1 // loop_body
      %s20 = ssub.s32 %s15, 1
      %s21 = ssub.s32 %s15, 2
      %s22 = sadd.s32 %s15, 1
      %s23 = ssub.s32 %s15, %s22
      %p24 = scmp.eq.s32.totalorder %s23, 0
      %s26 = sadd.s32 %s25, 1
      %s27 = scalar_select %p24, %s25, %s26
      %p30 = pneg %p24
      %p31 = scmp.eq.s32.totalorder %s15, 1
      %p32 = por %p30, %p31
      %p33 = scmp.ne.s32.totalorder %s25, %s28
      %p34 = scmp.eq.s32.totalorder %s15, 0
      %p35 = por %p33, %p34
      %p36 = scmp.ne.s32.totalorder %s25, %s28
      %p37 = scmp.eq.s32.totalorder %s20, 1
      %p38 = por %p36, %p37
      %p39 = scmp.ne.s32.totalorder %s28, %s29
      %p40 = scmp.eq.s32.totalorder %s20, 0
      %p41 = por %p39, %p40
      %p42 = scmp.ne.s32.totalorder %s28, %s29
      %p43 = scmp.eq.s32.totalorder %s21, 1
      %p44 = por %p42, %p43
      %p46 = scmp.ne.s32.totalorder %s29, %s45
      %p47 = scmp.eq.s32.totalorder %s21, 0
      %p48 = por %p46, %p47
      %s50 = sadd.s32 %s49, 1
      %p53 = scmp.eq.s32.totalorder %s15, 1
      %p54 = scmp.ne.s32.totalorder %s49, %s51
      %p55 = scmp.eq.s32.totalorder %s15, 0
      %p56 = por %p54, %p55
      %p57 = scmp.ne.s32.totalorder %s49, %s51
      %p58 = scmp.eq.s32.totalorder %s20, 1
      %p59 = por %p57, %p58
      %p60 = scmp.ne.s32.totalorder %s51, %s52
      %p61 = scmp.eq.s32.totalorder %s20, 0
      %p62 = por %p60, %p61
      %p63 = scmp.ne.s32.totalorder %s51, %s52
      %p64 = scmp.eq.s32.totalorder %s21, 1
      %p65 = por %p63, %p64
      %p67 = scmp.ne.s32.totalorder %s52, %s66
      %p68 = scmp.eq.s32.totalorder %s21, 0
      %p69 = por %p67, %p68
      %s71 = sadd.s32 %s70, 1
      %p74 = scmp.eq.s32.totalorder %s15, 1
      %p75 = scmp.ne.s32.totalorder %s70, %s72
      %p76 = scmp.eq.s32.totalorder %s15, 0
      %p77 = por %p75, %p76
      %p78 = scmp.ne.s32.totalorder %s70, %s72
      %p79 = scmp.eq.s32.totalorder %s20, 1
      %p80 = por %p78, %p79
      %p81 = scmp.ne.s32.totalorder %s72, %s73
      %p82 = scmp.eq.s32.totalorder %s20, 0
      %p83 = por %p81, %p82
      %p84 = scmp.ne.s32.totalorder %s72, %s73
      %p85 = scmp.eq.s32.totalorder %s21, 1
      %p86 = por %p84, %p85
      %p88 = scmp.ne.s32.totalorder %s73, %s87
      %p89 = scmp.eq.s32.totalorder %s21, 0
      %p90 = por %p88, %p89
      %s91 = ssub.s32 %s15, %s22
      %p92 = scmp.eq.s32.totalorder %s91, 0
      %s94 = sadd.s32 %s93, 1
      %s95 = scalar_select %p92, %s93, %s94
      %p98 = pneg %p92
      %p99 = scmp.eq.s32.totalorder %s15, 1
      %p100 = por %p98, %p99
      %p101 = scmp.ne.s32.totalorder %s93, %s96
      %p102 = scmp.eq.s32.totalorder %s15, 0
      %p103 = por %p101, %p102
      %p104 = scmp.ne.s32.totalorder %s93, %s96
      %p105 = scmp.eq.s32.totalorder %s20, 1
      %p106 = por %p104, %p105
      %p107 = scmp.ne.s32.totalorder %s96, %s97
      %p108 = scmp.eq.s32.totalorder %s20, 0
      %p109 = por %p107, %p108
      %p110 = scmp.ne.s32.totalorder %s96, %s97
      %p111 = scmp.eq.s32.totalorder %s21, 1
      %p112 = por %p110, %p111
      %p114 = scmp.ne.s32.totalorder %s97, %s113
      %p115 = scmp.eq.s32.totalorder %s21, 0
      %p116 = por %p114, %p115
      %p117 = scmp.le.s32.totalorder 1, %s15
      %p118 = scmp.lt.s32.totalorder %s15, 3
      %p119 = pnand %p117, %p118
      %p120 = pneg %p119
      // Predicated region
      $region9: #{tpu_custom_call.1} parent=5 // pred_check
        _
      $region10: #{tpu_custom_call.1} parent=5 // pred_check_branch
        %122 = sbr.rel (%p119) target = $region12
      $region11: #{tpu_custom_call.1} parent=5 // pred_region
        %s123 = ssub.s32 %s15, 1
        // Predicated region
        $region13: #{tpu_custom_call.1} parent=11 // pred_check
          %p124 = pneg %p62
        $region14: #{tpu_custom_call.1} parent=11 // pred_check_branch
          %126 = sbr.rel (%p124) target = $region16
        $region15: #{tpu_custom_call.1} parent=11 // pred_region
          _
        $region16: #{tpu_custom_call.1} parent=11 // pred_fallthru
          _
        // Predicated region
        $region17: #{tpu_custom_call.1} parent=11 // pred_check
          %p127 = pneg %p83
        $region18: #{tpu_custom_call.1} parent=11 // pred_check_branch
          %129 = sbr.rel (%p127) target = $region20
        $region19: #{tpu_custom_call.1} parent=11 // pred_region
          _
        $region20: #{tpu_custom_call.1} parent=11 // pred_fallthru
          _
      $region12: #{tpu_custom_call.1} parent=5 // pred_fallthru
        _
      %p130 = scmp.lt.s32.totalorder %s15, 2
      // Predicated region
      $region21: #{tpu_custom_call.1} parent=5 // pred_check
        %p131 = pneg %p130
      $region22: #{tpu_custom_call.1} parent=5 // pred_check_branch
        %133 = sbr.rel (%p131) target = $region24
      $region23: #{tpu_custom_call.1} parent=5 // pred_region
        // Predicated region
        $region25: #{tpu_custom_call.1} parent=23 // pred_check
          %p134 = pneg %p35
        $region26: #{tpu_custom_call.1} parent=23 // pred_check_branch
          %136 = sbr.rel (%p134) target = $region28
        $region27: #{tpu_custom_call.1} parent=23 // pred_region
          %s137 = sand.u32 %s25, 1
          %s138 = scalar_lea.sflag [#allocation3], %s137
          %s139 = sand.u32 %s25, 1
          %s140 = smul.addr %s139, 16
          %s141 = scalar_lea.vmem [#allocation2], %s140
          %s142 = smul.u32 2, %s15
          %s144 = ssub.s32 256, 256
          %145 = vsyncadd %s138, %s144
          %s146 = smul.addr %s142, 128
          %s147 = scalar_lea.hbm %s0, %s146
          %s148 = sshll.u32 %s141, 4
          %s149 = int_to_ptr.vmem [resolvable:$true] %s148
          %154 = dma.hbm_to_vmem [thread:$0]  %s147, 256, %s149, %s138, 128, 128, 8
        $region28: #{tpu_custom_call.1} parent=23 // pred_fallthru
          _
      $region24: #{tpu_custom_call.1} parent=5 // pred_fallthru
        _
      %p155 = scmp.le.s32.totalorder 1, %s15
      %p156 = scmp.lt.s32.totalorder %s15, 3
      %p157 = pnand %p155, %p156
      %p158 = pneg %p157
      // Predicated region
      $region29: #{tpu_custom_call.1} parent=5 // pred_check
        _
      $region30: #{tpu_custom_call.1} parent=5 // pred_check_branch
        %160 = sbr.rel (%p157) target = $region32
      $region31: #{tpu_custom_call.1} parent=5 // pred_region
        %s161 = ssub.s32 %s15, 1
        %s162 = sand.u32 %s28, 1
        %s163 = scalar_lea.sflag [#allocation3], %s162
        %s164 = sand.u32 %s28, 1
        %s165 = smul.addr %s164, 16
        %s166 = scalar_lea.vmem [#allocation2], %s165
        // Predicated region
        $region33: #{tpu_custom_call.1} parent=31 // pred_check
          %p167 = pneg %p41
        $region34: #{tpu_custom_call.1} parent=31 // pred_check_branch
          %169 = sbr.rel (%p167) target = $region36
        $region35: #{tpu_custom_call.1} parent=31 // pred_region
          %170 = dma.done %s163, 256
        $region36: #{tpu_custom_call.1} parent=31 // pred_fallthru
          _
        %s171 = sand.u32 %s28, 1
        %s172 = scalar_lea.sflag [#allocation3], %s171
        %s173 = sand.u32 %s28, 1
        %s174 = smul.addr %s173, 16
        %s175 = scalar_lea.vmem [#allocation2], %s174
        %p176 = pneg %p41
        %p177 = pneg %p38
        %p178 = pneg %p62
        %p179 = pneg %p59
        %p180 = pneg %p83
        %p181 = pneg %p80
        %p182 = pneg %p109
        %p183 = pneg %p106
        %s184 = sand.u32 %s96, 1
        %s185 = scalar_lea.sflag [#allocation4], %s184
        %s186 = sand.u32 %s96, 1
        %s187 = smul.addr %s186, 16
        %s188 = scalar_lea.vmem [#allocation5], %s187
        %s189 = smul.u32 2, %s20
        %s190 = smul.u32 2, %s20
        %v191 = vld [vmem:[%s166] sm:$0xff]
        %v192 = vld [vmem:[%s166 + $0x8] sm:$0xff]
        %v193 = vrot.slane %v191, 4
        %v194 = vadd.f32 %v191, %v193
        %v195 = vrot.slane %v194, 2
        %v196 = vadd.f32 %v194, %v195
        %v197 = vrot.slane %v196, 1
        %v198 = vadd.f32 %v196, %v197
        %v199 = vrot.slane %v192, 4
        %v200 = vadd.f32 %v192, %v199
        %v201 = vrot.slane %v200, 2
        %v202 = vadd.f32 %v200, %v201
        %v203 = vrot.slane %v202, 1
        %v204 = vadd.f32 %v202, %v203
        %v205 = vrcp.pop 8.0
        %v206 = vmul.f32 %v198, %v205
        %v207 = vmul.f32 %v204, %v205
        %v208 = vsub.f32 %v191, %v206
        %v209 = vsub.f32 %v192, %v207
        %v210 = vmul.f32 %v208, %v208
        %v211 = vmul.f32 %v209, %v209
        %v212 = vrot.slane %v210, 4
        %v213 = vadd.f32 %v210, %v212
        %v214 = vrot.slane %v213, 2
        %v215 = vadd.f32 %v213, %v214
        %v216 = vrot.slane %v215, 1
        %v217 = vadd.f32 %v215, %v216
        %v218 = vrot.slane %v211, 4
        %v219 = vadd.f32 %v211, %v218
        %v220 = vrot.slane %v219, 2
        %v221 = vadd.f32 %v219, %v220
        %v222 = vrot.slane %v221, 1
        %v223 = vadd.f32 %v221, %v222
        %v224 = vmul.f32 %v217, %v205
        %v225 = vmul.f32 %v223, %v205
        %v226 = vadd.f32 %v224, 1e-05
        %v227 = vadd.f32 %v225, 1e-05
        %v228 = vrsqrt.pop %v226
        %v229 = vrsqrt.pop %v227
        %v230 = vld [vmem:[%s1] sm:$0xff]
        %v231 = vld [vmem:[%s2] sm:$0xff]
        %v232 = vmul.f32 %v208, %v228
        %v233 = vmul.f32 %v209, %v229
        %235 = vset.pattern.permute.xlu0 0
        %236 = vperm.xlu0 %235, %v230
        %v237 = vpop.permute.xlu0 %236
        %v239 = vmul.f32 %v232, %v237
        %v240 = vmul.f32 %v233, %v237
        %242 = vset.pattern.permute.xlu0 0
        %243 = vperm.xlu0 %242, %v231
        %v244 = vpop.permute.xlu0 %243
        %v246 = vadd.f32 %v239, %v244
        %v247 = vadd.f32 %v240, %v244
        %248 = vst [vmem:[%s188] sm:$0xff] %v246
        %249 = vst [vmem:[%s188 + $0x8] sm:$0xff] %v247
        %s250 = sand.u32 %s96, 1
        %s251 = scalar_lea.sflag [#allocation4], %s250
        %s252 = sand.u32 %s96, 1
        %s253 = smul.addr %s252, 16
        %s254 = scalar_lea.vmem [#allocation5], %s253
        // Predicated region
        $region37: #{tpu_custom_call.1} parent=31 // pred_check
          %p255 = pneg %p106
        $region38: #{tpu_custom_call.1} parent=31 // pred_check_branch
          %257 = sbr.rel (%p255) target = $region40
        $region39: #{tpu_custom_call.1} parent=31 // pred_region
          %s258 = smul.u32 2, %s20
          %s260 = ssub.s32 256, 256
          %261 = vsyncadd %s251, %s260
          %s262 = smul.addr %s258, 128
          %s263 = scalar_lea.hbm %s3, %s262
          %s264 = sshll.u32 %s254, 4
          %s265 = int_to_ptr.vmem [resolvable:$true] %s264
          %270 = dma.vmem_to_hbm [thread:$0]  %s265, 256, %s263, %s251, 128, 128, 8
        $region40: #{tpu_custom_call.1} parent=31 // pred_fallthru
          _
      $region32: #{tpu_custom_call.1} parent=5 // pred_fallthru
        _
      %p271 = scmp.le.s32.totalorder 2, %s15
      // Predicated region
      $region41: #{tpu_custom_call.1} parent=5 // pred_check
        %p272 = pneg %p271
      $region42: #{tpu_custom_call.1} parent=5 // pred_check_branch
        %274 = sbr.rel (%p272) target = $region44
      $region43: #{tpu_custom_call.1} parent=5 // pred_region
        %s275 = ssub.s32 %s15, 2
        // Predicated region
        $region45: #{tpu_custom_call.1} parent=43 // pred_check
          %p276 = pneg %p112
        $region46: #{tpu_custom_call.1} parent=43 // pred_check_branch
          %278 = sbr.rel (%p276) target = $region48
        $region47: #{tpu_custom_call.1} parent=43 // pred_region
          %s279 = sand.u32 %s97, 1
          %s280 = scalar_lea.sflag [#allocation4], %s279
          %s281 = sand.u32 %s97, 1
          %s282 = smul.addr %s281, 16
          %s283 = scalar_lea.vmem [#allocation5], %s282
          %284 = dma.done %s280, 256
        $region48: #{tpu_custom_call.1} parent=43 // pred_fallthru
          _
      $region44: #{tpu_custom_call.1} parent=5 // pred_fallthru
        _
    $region6: #{tpu_custom_call.1} parent=1 // loop_footer
      %s19 = sadd.s32 1, %s15
    $region7: #{tpu_custom_call.1} parent=1 // loop_footer_branch
      %14 = sbr.rel target = $region3
    $region8: #{tpu_custom_call.1} parent=1 // loop_exit
      _
    %285 = vsyncpa [#allocation3], 1
    %s286 = scalar_lea.sflag [#allocation3], 1
    %287 = vsyncpa %s286, 1
    %288 = vsyncpa [#allocation4], 1
    %s289 = scalar_lea.sflag [#allocation4], 1
    %290 = vsyncpa %s289, 1

</llo_original>
